<compile_context>
chip_gen: v6e
topology: v6e:2x2x1
jax: 0.10.0
libtpu: 0.0.40
codegen_flags: <defaults>
</compile_context>

<pallas_src>
import functools

import jax
import jax.numpy as jnp
from jax.experimental import pallas as pl
from jax.experimental.pallas import tpu as pltpu

LN_EPS = 1e-5  # nn.LayerNorm default


def _patch_merge_kernel(x_ref, w_ref, b_ref, o_ref):
    """One-pass LayerNorm (affine folded into W) followed by xn @ W' + b'."""
    x = x_ref[...].astype(jnp.float32)                      # (TM, 4C)
    inv_c4 = 1.0 / x.shape[-1]
    s1 = jnp.sum(x, axis=-1, keepdims=True)
    s2 = jnp.sum(x * x, axis=-1, keepdims=True)
    mean = s1 * inv_c4
    var = jnp.maximum(s2 * inv_c4 - mean * mean, 0.0)
    xn = (x - mean) * jax.lax.rsqrt(var + LN_EPS)
    y = xn.astype(w_ref.dtype)                              # MXU-native dtype path
    acc = jnp.dot(y, w_ref[...], preferred_element_type=jnp.float32)
    o_ref[...] = (acc + b_ref[...].astype(jnp.float32)).astype(o_ref.dtype)


def _tpu_vmem_bytes():
    try:
        return int(pltpu.get_tpu_info().vmem_capacity_bytes)
    except Exception:
        return 64 << 20  # conservative fallback: v7x per-TensorCore VMEM


def _pick_tile_and_vmem(m_rows, c4, c2, x_bytes, w_bytes, o_bytes):
    """Pick the row tile TM and an explicit scoped-VMEM limit."""
    phys = _tpu_vmem_bytes()
    budget = int(phys * 0.6)  # headroom for compiler scratch / spills

    def need(tm):
        return (2 * tm * c4 * x_bytes      # double-buffered input tile
                + 2 * c4 * c2 * w_bytes    # resident weight (2 bufs by default)
                + 2 * tm * c2 * o_bytes    # double-buffered output tile
                + 2 * c2 * 4               # bias
                + 3 * tm * c4 * 4)         # f32 LN intermediates

    tm = 8
    for cand in (512, 256, 128, 64, 32, 16, 8):
        if cand > m_rows:
            continue
        if need(cand) <= budget:
            tm = cand
            break
    # Keep >=2 grid steps when there is enough work so the "parallel" axis can
    # actually be split across v7x's two TensorCores.
    while m_rows >= 256 and tm > 8 and pl.cdiv(m_rows, tm) < 2:
        tm //= 2

    vmem_limit = int(min(max(32 << 20, need(tm) + (16 << 20)), phys * 0.8))
    vmem_limit = int(max(vmem_limit, need(tm) + (2 << 20)))
    return tm, vmem_limit


@functools.partial(jax.jit, static_argnames=("H", "W"))
def patch_merging_forward(x, gamma, beta, w_t, *, H, W):
    """PatchMerging forward.

    Args:
      x:     (B, H*W, C) input features.
      gamma: (4C,) LayerNorm weight.
      beta:  (4C,) LayerNorm bias.
      w_t:   (4C, 2C) reduction weight, already transposed (PyTorch stores (2C, 4C)).
      H, W:  spatial resolution.

    Returns:
      (B, ceil(H/2)*ceil(W/2), 2C)
    """
    B, L, C = x.shape
    assert L == H * W, "input feature has wrong size"

    xv = x.reshape(B, H, W, C)
    if (H % 2 == 1) or (W % 2 == 1):  # same as F.pad(x, (0, 0, 0, W % 2, 0, H % 2))
        xv = jnp.pad(xv, ((0, 0), (0, H % 2), (0, W % 2), (0, 0)))
    Hp, Wp = xv.shape[1], xv.shape[2]
    H2, W2 = Hp // 2, Wp // 2
    L2 = H2 * W2

    # 2x2 gather as one layout op: (B,Hp,Wp,C) -> (B,H2,2,W2,2,C), swap the two
    # parity dims together, flatten to the (M, 4C) slab. Its 4C channel order
    # is [x0, x2, x1, x3]; the params are permuted below to match.
    xc = (xv.reshape(B, H2, 2, W2, 2, C)
            .transpose(0, 1, 3, 2, 4, 5)
            .reshape(B * L2, 4 * C))

    C4, C2 = 4 * C, 2 * C
    q = jnp.array([0, 2, 1, 3])  # PyTorch [x0,x1,x2,x3] order -> slab [x0,x2,x1,x3]
    gamma_p = gamma.reshape(4, C)[q, :].reshape(C4)
    beta_p = beta.reshape(4, C)[q, :].reshape(C4)
    w_p = w_t.reshape(4, C, C2)[q, :, :].reshape(C4, C2)
    # Fold the LN affine into the matmul:  LN(x) @ W = xn @ (g*W) + b @ W
    w_prime = (gamma_p[:, None].astype(jnp.float32)
               * w_p.astype(jnp.float32)).astype(w_t.dtype)
    b_prime = jnp.dot(beta_p.astype(jnp.float32),
                      w_p.astype(jnp.float32)).reshape(1, C2)

    M = B * L2
    Mp = M
    if M < 8:  # only pad (tiny) inputs whose row count is below one sublane tile
        Mp = 8
        xc = jnp.pad(xc, ((0, Mp - M), (0, 0)))

    TM, vmem_limit = _pick_tile_and_vmem(
        Mp, C4, C2, xc.dtype.itemsize, w_prime.dtype.itemsize, x.dtype.itemsize)

    out = pl.pallas_call(
        _patch_merge_kernel,
        out_shape=jax.ShapeDtypeStruct((Mp, C2), x.dtype),
        grid_spec=pltpu.PrefetchScalarGridSpec(
            num_scalar_prefetch=0,
            grid=(pl.cdiv(Mp, TM),),  # ragged last block: reads/writes are masked
            in_specs=[
                pl.BlockSpec((TM, C4), lambda i: (i, 0)),
                # Constant index_map: weight/bias stay resident in VMEM across
                # the whole grid (no per-step re-DMA, no per-step dtype cast).
                # TODO(synk): single-buffer these via pipeline_mode=pl.Buffered(1)
                # once confirmed on the target jax version (halves weight VMEM on v7x).
                pl.BlockSpec((C4, C2), lambda i: (0, 0)),
                pl.BlockSpec((1, C2), lambda i: (0, 0)),
            ],
            out_specs=pl.BlockSpec((TM, C2), lambda i: (i, 0)),
        ),
        compiler_params=pltpu.CompilerParams(
            dimension_semantics=("parallel",),
            vmem_limit_bytes=vmem_limit,
            # Let XLA fuse the gather/layout producer into the pallas_call
            # operand instead of materializing the (M, 4C) slab in HBM.
            allow_input_fusion=[True, False, False],
        ),
    )(xc, w_prime, b_prime)

    if Mp != M:
        out = out[:M]
    return out.reshape(B, L2, C2)


def _reference(x, gamma, beta, w_t, H, W):
    """Pure-JAX reference (mirrors the PyTorch module, standard channel order)."""
    B, L, C = x.shape
    xv = x.reshape(B, H, W, C).astype(jnp.float32)
    if (H % 2 == 1) or (W % 2 == 1):
        xv = jnp.pad(xv, ((0, 0), (0, H % 2), (0, W % 2), (0, 0)))
    x0 = xv[:, 0::2, 0::2, :]
    x1 = xv[:, 1::2, 0::2, :]
    x2 = xv[:, 0::2, 1::2, :]
    x3 = xv[:, 1::2, 1::2, :]
    xc = jnp.concatenate([x0, x1, x2, x3], axis=-1).reshape(B, -1, 4 * C)
    mean = jnp.mean(xc, axis=-1, keepdims=True)
    var = jnp.mean(jnp.square(xc - mean), axis=-1, keepdims=True)
    y = (xc - mean) / jnp.sqrt(var + LN_EPS) * gamma + beta
    return jnp.dot(y, w_t.astype(jnp.float32))


if __name__ == "__main__":
    key = jax.random.PRNGKey(0)

    def check(B, C, H, W, k):
        kx, kw, kg, kb = jax.random.split(k, 4)
        x = jax.random.normal(kx, (B, H * W, C), dtype=jnp.float32)
        gamma = 1.0 + 0.1 * jax.random.normal(kg, (4 * C,), dtype=jnp.float32)
        beta = 0.05 * jax.random.normal(kb, (4 * C,), dtype=jnp.float32)
        # nn.Linear(4C, 2C, bias=False).weight has shape (2C, 4C); we keep W^T.
        w = jax.random.normal(kw, (2 * C, 4 * C), dtype=jnp.float32) * 0.02
        w_t = w.T

        out = jax.block_until_ready(
            patch_merging_forward(x, gamma, beta, w_t, H=H, W=W))
        ref = _reference(x, gamma, beta, w_t, H, W)
        H2, W2 = (H + 1) // 2, (W + 1) // 2
        assert out.shape == (B, H2 * W2, 2 * C), out.shape
        err = float(jnp.max(jnp.abs(out - ref.astype(out.dtype))))
        assert jnp.allclose(out, ref.astype(out.dtype), atol=2e-4, rtol=2e-4), err

    k1, k2 = jax.random.split(key)
    check(2, 4, 16, 16, k1)   # even spatial dims: B=2, C=4, H=W=16 -> M=128
    check(1, 8, 7, 10, k2)    # odd H: exercises the pad path + ragged row tile

    print("KERNEL_OK")
</pallas_src>

<mosaic_0001>
module attributes {stable_mosaic.version = 11 : i64} {
  func.func @_patch_merge_kernel(%arg0: i32, %arg1: memref<128x16xf32, #tpu.memory_space<vmem>>, %arg2: memref<16x8xf32, #tpu.memory_space<vmem>>, %arg3: memref<1x8xf32, #tpu.memory_space<vmem>>, %arg4: memref<128x8xf32, #tpu.memory_space<vmem>>) attributes {dimension_semantics = [#tpu.dimension_semantics<parallel>], iteration_bounds = array<i64: 1>, scalar_prefetch = 0 : i64, scratch_operands = 0 : i64, tpu.core_type = #tpu.core_type<tc>, window_params = [{transform_indices = @transform_0, window_bounds = array<i64: 128, 16>}, {pipeline_mode = #tpu.pipeline_mode<synchronous>, transform_indices = @transform_1, window_bounds = array<i64: 16, 8>}, {pipeline_mode = #tpu.pipeline_mode<synchronous>, transform_indices = @transform_2, window_bounds = array<i64: 1, 8>}, {transform_indices = @transform_3, window_bounds = array<i64: 128, 8>}]} {
    %c0 = arith.constant 0 : index
    %c0_0 = arith.constant 0 : index
    %0 = vector.load %arg1[%c0, %c0_0] : memref<128x16xf32, #tpu.memory_space<vmem>>, vector<128x16xf32>
    %cst = arith.constant dense<0.000000e+00> : vector<128xf32>
    %1 = vector.multi_reduction <add>, %0, %cst [1] : vector<128x16xf32> to vector<128xf32>
    %2 = vector.shape_cast %1 : vector<128xf32> to vector<128x1xf32>
    %3 = arith.mulf %0, %0 : vector<128x16xf32>
    %cst_1 = arith.constant dense<0.000000e+00> : vector<128xf32>
    %4 = vector.multi_reduction <add>, %3, %cst_1 [1] : vector<128x16xf32> to vector<128xf32>
    %5 = vector.shape_cast %4 : vector<128xf32> to vector<128x1xf32>
    %cst_2 = arith.constant 6.250000e-02 : f32
    %6 = vector.broadcast %cst_2 : f32 to vector<128x1xf32>
    %7 = arith.mulf %2, %6 : vector<128x1xf32>
    %cst_3 = arith.constant 6.250000e-02 : f32
    %8 = vector.broadcast %cst_3 : f32 to vector<128x1xf32>
    %9 = arith.mulf %5, %8 : vector<128x1xf32>
    %10 = arith.mulf %7, %7 : vector<128x1xf32>
    %11 = arith.subf %9, %10 : vector<128x1xf32>
    %cst_4 = arith.constant 0.000000e+00 : f32
    %12 = vector.broadcast %cst_4 : f32 to vector<128x1xf32>
    %13 = arith.maximumf %11, %12 : vector<128x1xf32>
    %14 = vector.broadcast %7 : vector<128x1xf32> to vector<128x16xf32>
    %15 = arith.subf %0, %14 : vector<128x16xf32>
    %cst_5 = arith.constant 9.99999974E-6 : f32
    %16 = vector.broadcast %cst_5 : f32 to vector<128x1xf32>
    %17 = arith.addf %13, %16 : vector<128x1xf32>
    %18 = math.rsqrt %17 : vector<128x1xf32>
    %19 = vector.broadcast %18 : vector<128x1xf32> to vector<128x16xf32>
    %20 = arith.mulf %15, %19 : vector<128x16xf32>
    %c0_6 = arith.constant 0 : index
    %c0_7 = arith.constant 0 : index
    %21 = vector.load %arg2[%c0_6, %c0_7] : memref<16x8xf32, #tpu.memory_space<vmem>>, vector<16x8xf32>
    %cst_8 = arith.constant dense<0.000000e+00> : vector<128x8xf32>
    %22 = tpu.matmul %20, %21, %cst_8 {dimension_numbers = #tpu.dot_dimension_numbers<[1], [0], [0], [1], [0, 0, 1, 1], [], []>} : vector<128x16xf32>, vector<16x8xf32>, vector<128x8xf32> -> vector<128x8xf32>
    %c0_9 = arith.constant 0 : index
    %c0_10 = arith.constant 0 : index
    %23 = vector.load %arg3[%c0_9, %c0_10] : memref<1x8xf32, #tpu.memory_space<vmem>>, vector<1x8xf32>
    %24 = vector.broadcast %23 : vector<1x8xf32> to vector<128x8xf32>
    %25 = arith.addf %22, %24 : vector<128x8xf32>
    %c0_11 = arith.constant 0 : index
    %c0_12 = arith.constant 0 : index
    %26 = vector.load %arg4[%c0_11, %c0_12] : memref<128x8xf32, #tpu.memory_space<vmem>>, vector<128x8xf32>
    tpu.vector_store %arg4[%c0_11, %c0_12], %25 {strides = array<i32>} : memref<128x8xf32, #tpu.memory_space<vmem>>, vector<128x8xf32>,
    return
  }
  func.func @transform_0(%arg0: i32) -> (i32, i32) {
    %c0_i32 = arith.constant 0 : i32
    %c0_i32_0 = arith.constant 0 : i32
    return %arg0, %c0_i32 : i32, i32
  }
  func.func @transform_1(%arg0: i32) -> (i32, i32) {
    %c0_i32 = arith.constant 0 : i32
    %c0_i32_0 = arith.constant 0 : i32
    %c0_i32_1 = arith.constant 0 : i32
    return %c0_i32, %c0_i32_0 : i32, i32
  }
  func.func @transform_2(%arg0: i32) -> (i32, i32) {
    %c0_i32 = arith.constant 0 : i32
    %c0_i32_0 = arith.constant 0 : i32
    %c0_i32_1 = arith.constant 0 : i32
    return %c0_i32, %c0_i32_0 : i32, i32
  }
  func.func @transform_3(%arg0: i32) -> (i32, i32) {
    %c0_i32 = arith.constant 0 : i32
    %c0_i32_0 = arith.constant 0 : i32
    return %arg0, %c0_i32 : i32, i32
  }
}

</mosaic_0001>

<llo_original>
// kernel: patch_merging_forward.1
$region0: #{patch_merging_forward.1}
  #allocation0 [shape = 'u32[]', space=smem, size = 0x4, offset = 0x4, fixed_abs, tag = 'smem constant byte address 0x4 - core index']
  #allocation1 [shape = 'u32[144,128]{1,0:T(1,128)}', space=vmem, size = 0x12000, scoped, tag = 'internal scratch']
  %s0 = inlined_call_operand.vmem [shape: f32[128,16], index: 0, kind: input, shape index: {}]
  %s1 = inlined_call_operand.vmem [shape: f32[16,8], index: 1, kind: input, shape index: {}]
  %s2 = inlined_call_operand.vmem [shape: f32[1,8], index: 2, kind: input, shape index: {}]
  %s3 = inlined_call_operand.vmem [shape: f32[128,8], index: 3, kind: output, shape index: {}]
  %s4 = sld [smem:[#allocation0]]
  $region22: #{patch_merging_forward.1} parent=0
    _
  %s6 = ssub.s32 1, %s4
  %s7 = scalar_select 0, %s6, %s4
  // Predicated region
  $region2: #{patch_merging_forward.1} parent=0 // pred_check
    _
  $region3: #{patch_merging_forward.1} parent=0 // pred_check_branch
    %9 = sbr.rel (0) target = $region5
  $region4: #{patch_merging_forward.1} parent=0 // pred_region
    _
  $region5: #{patch_merging_forward.1} parent=0 // pred_fallthru
    _
  // Predicated region
  $region6: #{patch_merging_forward.1} parent=0 // pred_check
    _
  $region7: #{patch_merging_forward.1} parent=0 // pred_check_branch
    %11 = sbr.rel (0) target = $region9
  $region8: #{patch_merging_forward.1} parent=0 // pred_region
    _
  $region9: #{patch_merging_forward.1} parent=0 // pred_fallthru
    _
  // Predicated region
  $region10: #{patch_merging_forward.1} parent=0 // pred_check
    _
  $region11: #{patch_merging_forward.1} parent=0 // pred_check_branch
    %13 = sbr.rel (0) target = $region13
  $region12: #{patch_merging_forward.1} parent=0 // pred_region
    _
  $region13: #{patch_merging_forward.1} parent=0 // pred_fallthru
    _
  %v14 = vld [vmem:[%s0] sm:$0xff]
  %v15 = vld [vmem:[%s0 + $0x8] sm:$0xff]
  %v16 = vld [vmem:[%s0 + $0x10] sm:$0xff]
  %v17 = vld [vmem:[%s0 + $0x18] sm:$0xff]
  %v18 = vld [vmem:[%s0 + $0x20] sm:$0xff]
  %v19 = vld [vmem:[%s0 + $0x28] sm:$0xff]
  %v20 = vld [vmem:[%s0 + $0x30] sm:$0xff]
  %v21 = vld [vmem:[%s0 + $0x38] sm:$0xff]
  %v22 = vld [vmem:[%s0 + $0x40] sm:$0xff]
  %v23 = vld [vmem:[%s0 + $0x48] sm:$0xff]
  %v24 = vld [vmem:[%s0 + $0x50] sm:$0xff]
  %v25 = vld [vmem:[%s0 + $0x58] sm:$0xff]
  %v26 = vld [vmem:[%s0 + $0x60] sm:$0xff]
  %v27 = vld [vmem:[%s0 + $0x68] sm:$0xff]
  %v28 = vld [vmem:[%s0 + $0x70] sm:$0xff]
  %v29 = vld [vmem:[%s0 + $0x78] sm:$0xff]
  %vm30 = vcmask 130048
  %v31 = vsel %vm30, %v14, 0.0
  %32 = vadd.xlane.f32.xlu0 %v31
  %v33 = vpop.xlane.xlu0 %32
  %v34 = vsel %vm30, %v15, 0.0
  %35 = vadd.xlane.f32.xlu0 %v34
  %v36 = vpop.xlane.xlu0 %35
  %v37 = vsel %vm30, %v16, 0.0
  %38 = vadd.xlane.f32.xlu0 %v37
  %v39 = vpop.xlane.xlu0 %38
  %v40 = vsel %vm30, %v17, 0.0
  %41 = vadd.xlane.f32.xlu0 %v40
  %v42 = vpop.xlane.xlu0 %41
  %v43 = vsel %vm30, %v18, 0.0
  %44 = vadd.xlane.f32.xlu0 %v43
  %v45 = vpop.xlane.xlu0 %44
  %v46 = vsel %vm30, %v19, 0.0
  %47 = vadd.xlane.f32.xlu0 %v46
  %v48 = vpop.xlane.xlu0 %47
  %v49 = vsel %vm30, %v20, 0.0
  %50 = vadd.xlane.f32.xlu0 %v49
  %v51 = vpop.xlane.xlu0 %50
  %v52 = vsel %vm30, %v21, 0.0
  %53 = vadd.xlane.f32.xlu0 %v52
  %v54 = vpop.xlane.xlu0 %53
  %v55 = vsel %vm30, %v22, 0.0
  %56 = vadd.xlane.f32.xlu0 %v55
  %v57 = vpop.xlane.xlu0 %56
  %v58 = vsel %vm30, %v23, 0.0
  %59 = vadd.xlane.f32.xlu0 %v58
  %v60 = vpop.xlane.xlu0 %59
  %v61 = vsel %vm30, %v24, 0.0
  %62 = vadd.xlane.f32.xlu0 %v61
  %v63 = vpop.xlane.xlu0 %62
  %v64 = vsel %vm30, %v25, 0.0
  %65 = vadd.xlane.f32.xlu0 %v64
  %v66 = vpop.xlane.xlu0 %65
  %v67 = vsel %vm30, %v26, 0.0
  %68 = vadd.xlane.f32.xlu0 %v67
  %v69 = vpop.xlane.xlu0 %68
  %v70 = vsel %vm30, %v27, 0.0
  %71 = vadd.xlane.f32.xlu0 %v70
  %v72 = vpop.xlane.xlu0 %71
  %v73 = vsel %vm30, %v28, 0.0
  %74 = vadd.xlane.f32.xlu0 %v73
  %v75 = vpop.xlane.xlu0 %74
  %v76 = vsel %vm30, %v29, 0.0
  %77 = vadd.xlane.f32.xlu0 %v76
  %v78 = vpop.xlane.xlu0 %77
  %v79 = vmul.f32 %v14, %v14
  %v80 = vmul.f32 %v15, %v15
  %v81 = vmul.f32 %v16, %v16
  %v82 = vmul.f32 %v17, %v17
  %v83 = vmul.f32 %v18, %v18
  %v84 = vmul.f32 %v19, %v19
  %v85 = vmul.f32 %v20, %v20
  %v86 = vmul.f32 %v21, %v21
  %v87 = vmul.f32 %v22, %v22
  %v88 = vmul.f32 %v23, %v23
  %v89 = vmul.f32 %v24, %v24
  %v90 = vmul.f32 %v25, %v25
  %v91 = vmul.f32 %v26, %v26
  %v92 = vmul.f32 %v27, %v27
  %v93 = vmul.f32 %v28, %v28
  %v94 = vmul.f32 %v29, %v29
  %v95 = vsel %vm30, %v79, 0.0
  %96 = vadd.xlane.f32.xlu0 %v95
  %v97 = vpop.xlane.xlu0 %96
  %v98 = vsel %vm30, %v80, 0.0
  %99 = vadd.xlane.f32.xlu0 %v98
  %v100 = vpop.xlane.xlu0 %99
  %v101 = vsel %vm30, %v81, 0.0
  %102 = vadd.xlane.f32.xlu0 %v101
  %v103 = vpop.xlane.xlu0 %102
  %v104 = vsel %vm30, %v82, 0.0
  %105 = vadd.xlane.f32.xlu0 %v104
  %v106 = vpop.xlane.xlu0 %105
  %v107 = vsel %vm30, %v83, 0.0
  %108 = vadd.xlane.f32.xlu0 %v107
  %v109 = vpop.xlane.xlu0 %108
  %v110 = vsel %vm30, %v84, 0.0
  %111 = vadd.xlane.f32.xlu0 %v110
  %v112 = vpop.xlane.xlu0 %111
  %v113 = vsel %vm30, %v85, 0.0
  %114 = vadd.xlane.f32.xlu0 %v113
  %v115 = vpop.xlane.xlu0 %114
  %v116 = vsel %vm30, %v86, 0.0
  %117 = vadd.xlane.f32.xlu0 %v116
  %v118 = vpop.xlane.xlu0 %117
  %v119 = vsel %vm30, %v87, 0.0
  %120 = vadd.xlane.f32.xlu0 %v119
  %v121 = vpop.xlane.xlu0 %120
  %v122 = vsel %vm30, %v88, 0.0
  %123 = vadd.xlane.f32.xlu0 %v122
  %v124 = vpop.xlane.xlu0 %123
  %v125 = vsel %vm30, %v89, 0.0
  %126 = vadd.xlane.f32.xlu0 %v125
  %v127 = vpop.xlane.xlu0 %126
  %v128 = vsel %vm30, %v90, 0.0
  %129 = vadd.xlane.f32.xlu0 %v128
  %v130 = vpop.xlane.xlu0 %129
  %v131 = vsel %vm30, %v91, 0.0
  %132 = vadd.xlane.f32.xlu0 %v131
  %v133 = vpop.xlane.xlu0 %132
  %v134 = vsel %vm30, %v92, 0.0
  %135 = vadd.xlane.f32.xlu0 %v134
  %v136 = vpop.xlane.xlu0 %135
  %v137 = vsel %vm30, %v93, 0.0
  %138 = vadd.xlane.f32.xlu0 %v137
  %v139 = vpop.xlane.xlu0 %138
  %v140 = vsel %vm30, %v94, 0.0
  %141 = vadd.xlane.f32.xlu0 %v140
  %v142 = vpop.xlane.xlu0 %141
  %v143 = vmul.f32 %v33, 0.0625
  %v144 = vmul.f32 %v36, 0.0625
  %v145 = vmul.f32 %v39, 0.0625
  %v146 = vmul.f32 %v42, 0.0625
  %v147 = vmul.f32 %v45, 0.0625
  %v148 = vmul.f32 %v48, 0.0625
  %v149 = vmul.f32 %v51, 0.0625
  %v150 = vmul.f32 %v54, 0.0625
  %v151 = vmul.f32 %v57, 0.0625
  %v152 = vmul.f32 %v60, 0.0625
  %v153 = vmul.f32 %v63, 0.0625
  %v154 = vmul.f32 %v66, 0.0625
  %v155 = vmul.f32 %v69, 0.0625
  %v156 = vmul.f32 %v72, 0.0625
  %v157 = vmul.f32 %v75, 0.0625
  %v158 = vmul.f32 %v78, 0.0625
  %v159 = vmul.f32 %v97, 0.0625
  %v160 = vmul.f32 %v100, 0.0625
  %v161 = vmul.f32 %v103, 0.0625
  %v162 = vmul.f32 %v106, 0.0625
  %v163 = vmul.f32 %v109, 0.0625
  %v164 = vmul.f32 %v112, 0.0625
  %v165 = vmul.f32 %v115, 0.0625
  %v166 = vmul.f32 %v118, 0.0625
  %v167 = vmul.f32 %v121, 0.0625
  %v168 = vmul.f32 %v124, 0.0625
  %v169 = vmul.f32 %v127, 0.0625
  %v170 = vmul.f32 %v130, 0.0625
  %v171 = vmul.f32 %v133, 0.0625
  %v172 = vmul.f32 %v136, 0.0625
  %v173 = vmul.f32 %v139, 0.0625
  %v174 = vmul.f32 %v142, 0.0625
  %v175 = vmul.f32 %v143, %v143
  %v176 = vmul.f32 %v144, %v144
  %v177 = vmul.f32 %v145, %v145
  %v178 = vmul.f32 %v146, %v146
  %v179 = vmul.f32 %v147, %v147
  %v180 = vmul.f32 %v148, %v148
  %v181 = vmul.f32 %v149, %v149
  %v182 = vmul.f32 %v150, %v150
  %v183 = vmul.f32 %v151, %v151
  %v184 = vmul.f32 %v152, %v152
  %v185 = vmul.f32 %v153, %v153
  %v186 = vmul.f32 %v154, %v154
  %v187 = vmul.f32 %v155, %v155
  %v188 = vmul.f32 %v156, %v156
  %v189 = vmul.f32 %v157, %v157
  %v190 = vmul.f32 %v158, %v158
  %v191 = vsub.f32 %v159, %v175
  %v192 = vsub.f32 %v160, %v176
  %v193 = vsub.f32 %v161, %v177
  %v194 = vsub.f32 %v162, %v178
  %v195 = vsub.f32 %v163, %v179
  %v196 = vsub.f32 %v164, %v180
  %v197 = vsub.f32 %v165, %v181
  %v198 = vsub.f32 %v166, %v182
  %v199 = vsub.f32 %v167, %v183
  %v200 = vsub.f32 %v168, %v184
  %v201 = vsub.f32 %v169, %v185
  %v202 = vsub.f32 %v170, %v186
  %v203 = vsub.f32 %v171, %v187
  %v204 = vsub.f32 %v172, %v188
  %v205 = vsub.f32 %v173, %v189
  %v206 = vsub.f32 %v174, %v190
  %v207 = vmax.f32 %v191, 0.0
  %v208 = vmax.f32 %v192, 0.0
  %v209 = vmax.f32 %v193, 0.0
  %v210 = vmax.f32 %v194, 0.0
  %v211 = vmax.f32 %v195, 0.0
  %v212 = vmax.f32 %v196, 0.0
  %v213 = vmax.f32 %v197, 0.0
  %v214 = vmax.f32 %v198, 0.0
  %v215 = vmax.f32 %v199, 0.0
  %v216 = vmax.f32 %v200, 0.0
  %v217 = vmax.f32 %v201, 0.0
  %v218 = vmax.f32 %v202, 0.0
  %v219 = vmax.f32 %v203, 0.0
  %v220 = vmax.f32 %v204, 0.0
  %v221 = vmax.f32 %v205, 0.0
  %v222 = vmax.f32 %v206, 0.0
  %v223 = vsub.f32 %v14, %v143
  %v224 = vsub.f32 %v15, %v144
  %v225 = vsub.f32 %v16, %v145
  %v226 = vsub.f32 %v17, %v146
  %v227 = vsub.f32 %v18, %v147
  %v228 = vsub.f32 %v19, %v148
  %v229 = vsub.f32 %v20, %v149
  %v230 = vsub.f32 %v21, %v150
  %v231 = vsub.f32 %v22, %v151
  %v232 = vsub.f32 %v23, %v152
  %v233 = vsub.f32 %v24, %v153
  %v234 = vsub.f32 %v25, %v154
  %v235 = vsub.f32 %v26, %v155
  %v236 = vsub.f32 %v27, %v156
  %v237 = vsub.f32 %v28, %v157
  %v238 = vsub.f32 %v29, %v158
  %v239 = vadd.f32 %v207, 1e-05
  %v240 = vadd.f32 %v208, 1e-05
  %v241 = vadd.f32 %v209, 1e-05
  %v242 = vadd.f32 %v210, 1e-05
  %v243 = vadd.f32 %v211, 1e-05
  %v244 = vadd.f32 %v212, 1e-05
  %v245 = vadd.f32 %v213, 1e-05
  %v246 = vadd.f32 %v214, 1e-05
  %v247 = vadd.f32 %v215, 1e-05
  %v248 = vadd.f32 %v216, 1e-05
  %v249 = vadd.f32 %v217, 1e-05
  %v250 = vadd.f32 %v218, 1e-05
  %v251 = vadd.f32 %v219, 1e-05
  %v252 = vadd.f32 %v220, 1e-05
  %v253 = vadd.f32 %v221, 1e-05
  %v254 = vadd.f32 %v222, 1e-05
  %v255 = vrsqrt.pop %v239
  %v256 = vrsqrt.pop %v240
  %v257 = vrsqrt.pop %v241
  %v258 = vrsqrt.pop %v242
  %v259 = vrsqrt.pop %v243
  %v260 = vrsqrt.pop %v244
  %v261 = vrsqrt.pop %v245
  %v262 = vrsqrt.pop %v246
  %v263 = vrsqrt.pop %v247
  %v264 = vrsqrt.pop %v248
  %v265 = vrsqrt.pop %v249
  %v266 = vrsqrt.pop %v250
  %v267 = vrsqrt.pop %v251
  %v268 = vrsqrt.pop %v252
  %v269 = vrsqrt.pop %v253
  %v270 = vrsqrt.pop %v254
  %v271 = vmul.f32 %v223, %v255
  %v272 = vmul.f32 %v224, %v256
  %v273 = vmul.f32 %v225, %v257
  %v274 = vmul.f32 %v226, %v258
  %v275 = vmul.f32 %v227, %v259
  %v276 = vmul.f32 %v228, %v260
  %v277 = vmul.f32 %v229, %v261
  %v278 = vmul.f32 %v230, %v262
  %v279 = vmul.f32 %v231, %v263
  %v280 = vmul.f32 %v232, %v264
  %v281 = vmul.f32 %v233, %v265
  %v282 = vmul.f32 %v234, %v266
  %v283 = vmul.f32 %v235, %v267
  %v284 = vmul.f32 %v236, %v268
  %v285 = vmul.f32 %v237, %v269
  %v286 = vmul.f32 %v238, %v270
  %v287 = vld [vmem:[%s1] sm:$0xff]
  %v288 = vld [vmem:[%s1 + $0x8] sm:$0xff]
  %v289 = vld [vmem:[%s2] sm:$0x1]
  %v291 = vlaneseq
  %v292 = vshrl.u32 %v291, 7
  %v293 = vsub.s32 0, %v292
  %v294 = vrot.slane %v289, %v293
  %v297 = vsel %vm30, %v271, 0
  %v300 = vsel %vm30, %v272, 0
  %v303 = vsel %vm30, %v273, 0
  %v306 = vsel %vm30, %v274, 0
  %v309 = vsel %vm30, %v275, 0
  %v312 = vsel %vm30, %v276, 0
  %v315 = vsel %vm30, %v277, 0
  %v318 = vsel %vm30, %v278, 0
  %v321 = vsel %vm30, %v279, 0
  %v324 = vsel %vm30, %v280, 0
  %v327 = vsel %vm30, %v281, 0
  %v330 = vsel %vm30, %v282, 0
  %v333 = vsel %vm30, %v283, 0
  %v336 = vsel %vm30, %v284, 0
  %v339 = vsel %vm30, %v285, 0
  %v342 = vsel %vm30, %v286, 0
  %344 = vmatprep.subr.mxu0 0.0
  %345 = vmatpush1.msra.mxu0 0.0
  %346 = vmatprep.subr.mxu0 0.0
  %347 = vmatpush1.msra.mxu0 0.0
  %348 = vmatprep.subr.mxu0 0.0
  %349 = vmatpush1.msra.mxu0 0.0
  %350 = vmatprep.subr.mxu0 0.0
  %351 = vmatpush1.msra.mxu0 0.0
  %352 = vmatprep.subr.mxu0 0.0
  %353 = vmatpush1.msra.mxu0 0.0
  %354 = vmatprep.subr.mxu0 0.0
  %355 = vmatpush1.msra.mxu0 0.0
  %356 = vmatprep.subr.mxu0 0.0
  %357 = vmatpush1.msra.mxu0 0.0
  %358 = vmatprep.subr.mxu0 0.0
  %359 = vmatpush1.msra.mxu0 0.0
  %360 = vmatprep.subr.mxu0 0.0
  %361 = vmatpush1.msra.mxu0 0.0
  %362 = vmatprep.subr.mxu0 0.0
  %363 = vmatpush1.msra.mxu0 0.0
  %364 = vmatprep.subr.mxu0 0.0
  %365 = vmatpush1.msra.mxu0 0.0
  %366 = vmatprep.subr.mxu0 0.0
  %367 = vmatpush1.msra.mxu0 0.0
  %368 = vmatprep.subr.mxu0 0.0
  %369 = vmatpush1.msra.mxu0 0.0
  %370 = vmatprep.subr.mxu0 0.0
  %371 = vmatpush1.msra.mxu0 0.0
  %372 = vmatprep.subr.mxu0 0.0
  %373 = vmatpush1.msra.mxu0 %v288
  %374 = vmatprep.subr.mxu0 0.0
  %375 = vmatpush1.msra.mxu0 %v287
  %376 = vmatprep.subr.mxu0 0.0
  %377 = vmatpush2.msra.mxu0 0.0
  %378 = vmatprep.subr.mxu0 0.0
  %379 = vmatpush2.msra.mxu0 0.0
  %380 = vmatprep.subr.mxu0 0.0
  %381 = vmatpush2.msra.mxu0 0.0
  %382 = vmatprep.subr.mxu0 0.0
  %383 = vmatpush2.msra.mxu0 0.0
  %384 = vmatprep.subr.mxu0 0.0
  %385 = vmatpush2.msra.mxu0 0.0
  %386 = vmatprep.subr.mxu0 0.0
  %387 = vmatpush2.msra.mxu0 0.0
  %388 = vmatprep.subr.mxu0 0.0
  %389 = vmatpush2.msra.mxu0 0.0
  %390 = vmatprep.subr.mxu0 0.0
  %391 = vmatpush2.msra.mxu0 0.0
  %392 = vmatprep.subr.mxu0 0.0
  %393 = vmatpush2.msra.mxu0 0.0
  %394 = vmatprep.subr.mxu0 0.0
  %395 = vmatpush2.msra.mxu0 0.0
  %396 = vmatprep.subr.mxu0 0.0
  %397 = vmatpush2.msra.mxu0 0.0
  %398 = vmatprep.subr.mxu0 0.0
  %399 = vmatpush2.msra.mxu0 0.0
  %400 = vmatprep.subr.mxu0 0.0
  %401 = vmatpush2.msra.mxu0 0.0
  %402 = vmatprep.subr.mxu0 0.0
  %403 = vmatpush2.msra.mxu0 0.0
  %404 = vmatprep.subr.mxu0 0.0
  %405 = vmatpush2.msra.mxu0 0.0
  %406 = vmatprep.subr.mxu0 0.0
  %407 = vmatpush2.msra.mxu0 0.0
  %408 = vmatprep.mubr.f32.mxu0 0.0
  %409 = vmatmul.mubr.f32.gmra.mxu0 %v297
  %v410 = vpop.f32.mrf.mxu0
  %v411 = vadd.f32 %v294, %v410
  %v412 = vpop.f32.mrf.mxu0
  %413 = vmatprep.mubr.f32.mxu0 0.0
  %414 = vmatmul.mubr.f32.gmra.mxu0 %v300
  %v415 = vpop.f32.mrf.mxu0
  %v416 = vadd.f32 %v294, %v415
  %v417 = vpop.f32.mrf.mxu0
  %418 = vmatprep.mubr.f32.mxu0 0.0
  %419 = vmatmul.mubr.f32.gmra.mxu0 %v303
  %v420 = vpop.f32.mrf.mxu0
  %v421 = vadd.f32 %v294, %v420
  %v422 = vpop.f32.mrf.mxu0
  %423 = vmatprep.mubr.f32.mxu0 0.0
  %424 = vmatmul.mubr.f32.gmra.mxu0 %v306
  %v425 = vpop.f32.mrf.mxu0
  %v426 = vadd.f32 %v294, %v425
  %v427 = vpop.f32.mrf.mxu0
  %428 = vmatprep.mubr.f32.mxu0 0.0
  %429 = vmatmul.mubr.f32.gmra.mxu0 %v309
  %v430 = vpop.f32.mrf.mxu0
  %v431 = vadd.f32 %v294, %v430
  %v432 = vpop.f32.mrf.mxu0
  %433 = vmatprep.mubr.f32.mxu0 0.0
  %434 = vmatmul.mubr.f32.gmra.mxu0 %v312
  %v435 = vpop.f32.mrf.mxu0
  %v436 = vadd.f32 %v294, %v435
  %v437 = vpop.f32.mrf.mxu0
  %438 = vmatprep.mubr.f32.mxu0 0.0
  %439 = vmatmul.mubr.f32.gmra.mxu0 %v315
  %v440 = vpop.f32.mrf.mxu0
  %v441 = vadd.f32 %v294, %v440
  %v442 = vpop.f32.mrf.mxu0
  %443 = vmatprep.mubr.f32.mxu0 0.0
  %444 = vmatmul.mubr.f32.gmra.mxu0 %v318
  %v445 = vpop.f32.mrf.mxu0
  %v446 = vadd.f32 %v294, %v445
  %v447 = vpop.f32.mrf.mxu0
  %448 = vmatprep.mubr.f32.mxu0 0.0
  %449 = vmatmul.mubr.f32.gmra.mxu0 %v321
  %v450 = vpop.f32.mrf.mxu0
  %v451 = vadd.f32 %v294, %v450
  %v452 = vpop.f32.mrf.mxu0
  %453 = vmatprep.mubr.f32.mxu0 0.0
  %454 = vmatmul.mubr.f32.gmra.mxu0 %v324
  %v455 = vpop.f32.mrf.mxu0
  %v456 = vadd.f32 %v294, %v455
  %v457 = vpop.f32.mrf.mxu0
  %458 = vmatprep.mubr.f32.mxu0 0.0
  %459 = vmatmul.mubr.f32.gmra.mxu0 %v327
  %v460 = vpop.f32.mrf.mxu0
  %v461 = vadd.f32 %v294, %v460
  %v462 = vpop.f32.mrf.mxu0
  %463 = vmatprep.mubr.f32.mxu0 0.0
  %464 = vmatmul.mubr.f32.gmra.mxu0 %v330
  %v465 = vpop.f32.mrf.mxu0
  %v466 = vadd.f32 %v294, %v465
  %v467 = vpop.f32.mrf.mxu0
  %468 = vmatprep.mubr.f32.mxu0 0.0
  %469 = vmatmul.mubr.f32.gmra.mxu0 %v333
  %v470 = vpop.f32.mrf.mxu0
  %v471 = vadd.f32 %v294, %v470
  %v472 = vpop.f32.mrf.mxu0
  %473 = vmatprep.mubr.f32.mxu0 0.0
  %474 = vmatmul.mubr.f32.gmra.mxu0 %v336
  %v475 = vpop.f32.mrf.mxu0
  %v476 = vadd.f32 %v294, %v475
  %v477 = vpop.f32.mrf.mxu0
  %478 = vmatprep.mubr.f32.mxu0 0.0
  %479 = vmatmul.mubr.f32.gmra.mxu0 %v339
  %v480 = vpop.f32.mrf.mxu0
  %v481 = vadd.f32 %v294, %v480
  %v482 = vpop.f32.mrf.mxu0
  %483 = vmatprep.mubr.f32.mxu0 0.0
  %484 = vmatmul.mubr.f32.gmra.mxu0 %v342
  %v485 = vpop.f32.mrf.mxu0
  %v486 = vadd.f32 %v294, %v485
  %v487 = vpop.f32.mrf.mxu0
  %488 = vdwg.mxu0
  %vm489 = vcmask 64512
  %490 = vst.msk [vmem:[%s3] sm:$0xff] %vm489, %v411
  %491 = vst.msk [vmem:[%s3 + $0x8] sm:$0xff] %vm489, %v416
  %492 = vst.msk [vmem:[%s3 + $0x10] sm:$0xff] %vm489, %v421
  %493 = vst.msk [vmem:[%s3 + $0x18] sm:$0xff] %vm489, %v426
  %494 = vst.msk [vmem:[%s3 + $0x20] sm:$0xff] %vm489, %v431
  %495 = vst.msk [vmem:[%s3 + $0x28] sm:$0xff] %vm489, %v436
  %496 = vst.msk [vmem:[%s3 + $0x30] sm:$0xff] %vm489, %v441
  %497 = vst.msk [vmem:[%s3 + $0x38] sm:$0xff] %vm489, %v446
  %498 = vst.msk [vmem:[%s3 + $0x40] sm:$0xff] %vm489, %v451
  %499 = vst.msk [vmem:[%s3 + $0x48] sm:$0xff] %vm489, %v456
  %500 = vst.msk [vmem:[%s3 + $0x50] sm:$0xff] %vm489, %v461
  %501 = vst.msk [vmem:[%s3 + $0x58] sm:$0xff] %vm489, %v466
  %502 = vst.msk [vmem:[%s3 + $0x60] sm:$0xff] %vm489, %v471
  %503 = vst.msk [vmem:[%s3 + $0x68] sm:$0xff] %vm489, %v476
  %504 = vst.msk [vmem:[%s3 + $0x70] sm:$0xff] %vm489, %v481
  %505 = vst.msk [vmem:[%s3 + $0x78] sm:$0xff] %vm489, %v486
  // Predicated region
  $region14: #{patch_merging_forward.1} parent=0 // pred_check
    _
  $region15: #{patch_merging_forward.1} parent=0 // pred_check_branch
    %507 = sbr.rel (0) target = $region17
  $region16: #{patch_merging_forward.1} parent=0 // pred_region
    _
  $region17: #{patch_merging_forward.1} parent=0 // pred_fallthru
    _
  // Predicated region
  $region18: #{patch_merging_forward.1} parent=0 // pred_check
    _
  $region19: #{patch_merging_forward.1} parent=0 // pred_check_branch
    %509 = sbr.rel (0) target = $region21
  $region20: #{patch_merging_forward.1} parent=0 // pred_region
    _
  $region21: #{patch_merging_forward.1} parent=0 // pred_fallthru
    _

</llo_original>
